<compile_context>
chip_gen: v6e
topology: v6e:2x2x1
jax: 0.10.0
libtpu: 0.0.40
codegen_flags: <defaults>
</compile_context>

<pallas_src>
import functools

import numpy as np
import jax
import jax.numpy as jnp
from jax.experimental import pallas as pl
from jax.experimental.pallas import tpu as pltpu


def _round_up(x, m):
    return (x + m - 1) // m * m


def policy_head_kernel(wconv_ref, bconv_ref, x_ref, wd_ref, bd_ref, out_ref,
                       *, approx_recip):
    # wconv_ref: SMEM (2, cb)            BN-folded 1x1-conv weights (f32 scalars)
    # bconv_ref: SMEM (2,)               BN-folded conv bias (f32 scalars)
    # x_ref:     VMEM (block_bs, cb*P)   batch on sublanes, natural NCHW flatten
    # wd_ref:    VMEM (2*P, out_pad)     dense weight (channel-major rows), resident
    # bd_ref:    VMEM (1, out_pad)       f32 dense bias (-1e30 in padded columns), resident
    # out_ref:   VMEM (block_bs, out_pad) softmax probabilities (lane-dense)
    P = wd_ref.shape[0] // 2
    cb = x_ref.shape[1] // P

    # ---- fused 1x1 conv + folded BN (VPU FMAs over lane-aligned channel slabs),
    # ---- ReLU, then one MXU dot per conv output channel against the resident weight.
    acc = None
    for c in range(2):
        a = wconv_ref[c, 0] * x_ref[:, 0:P].astype(jnp.float32)
        for k in range(1, cb):
            a = a + wconv_ref[c, k] * x_ref[:, k * P:(k + 1) * P].astype(jnp.float32)
        a = jnp.maximum(a + bconv_ref[c], 0.0).astype(wd_ref.dtype)   # (block_bs, P)
        part = jnp.dot(a, wd_ref[c * P:(c + 1) * P, :],
                       preferred_element_type=jnp.float32)            # (block_bs, out_pad)
        acc = part if acc is None else acc + part

    logits = acc + bd_ref[...]        # f32 bias add; padded columns become -1e30

    # ---- softmax over the lane-dense (padded) action dimension ----
    m = jnp.max(logits, axis=1, keepdims=True)
    e = jnp.exp(logits - m)                       # padded cols: exp(-1e30 - m) == 0.0
    denom = jnp.sum(e, axis=1, keepdims=True)
    out_ref[...] = e * pl.reciprocal(denom, approx=approx_recip)


def _choose_block_bs(bs, requested):
    bs_min = _round_up(bs, 8)
    blk = min(_round_up(requested, 8), bs_min)
    # Prefer >= 2 grid steps when the batch allows it (v7x has 2 TensorCores and
    # the batch axis is marked "parallel"); harmless on single-TC v5e/v6e.
    if bs_min > 8 and bs_min // blk < 2:
        blk = max(8, _round_up((bs_min + 1) // 2, 8))
    return blk


def policy_head(x_nchw, wconv, bconv, gamma, beta, running_mean, running_var,
                wdense, bdense, *, eps=1e-5, block_bs=256,
                dense_dtype=jnp.bfloat16, approx_recip=True):
    """x_nchw: (bs, cb, H, W), PyTorch NCHW convention (f32 or bf16)."""
    bs, cb, H, W = x_nchw.shape
    P = H * W
    out_size = wdense.shape[0]

    P_pad = _round_up(P, 128)
    out_pad = _round_up(out_size, 128)
    block_bs = _choose_block_bs(bs, block_bs)
    bs_pad = _round_up(bs, block_bs)
    grid = (bs_pad // block_bs,)

    # --- fold BatchNorm (inference mode) into the conv weight / bias (glue) ---
    # TODO(synk): training-mode BN (batch statistics) is not implemented.
    scale = (gamma.astype(jnp.float32) /
             jnp.sqrt(running_var.astype(jnp.float32) + eps))
    wconv_f = wconv.astype(jnp.float32) * scale[:, None]                 # (2, cb)
    bconv_f = (bconv.astype(jnp.float32) * scale
               + beta.astype(jnp.float32) - running_mean.astype(jnp.float32) * scale)

    # --- x: free NCHW row-major flatten, batch on sublanes: (bs_pad, cb*P_pad) ---
    x_flat = x_nchw.reshape(bs, cb, P)
    x_flat = jnp.pad(x_flat, ((0, bs_pad - bs), (0, 0), (0, P_pad - P)))
    x_flat = x_flat.reshape(bs_pad, cb * P_pad)

    # --- dense weight: (2*P_pad, out_pad) channel-major rows; padded rows/cols are 0,
    #     so padded spatial positions (which see ReLU(bias) != 0) contribute nothing ---
    wd = jnp.transpose(wdense.astype(jnp.float32)).reshape(2, P, out_size)
    wd = jnp.pad(wd, ((0, 0), (0, P_pad - P), (0, out_pad - out_size)))
    wd = wd.reshape(2 * P_pad, out_pad).astype(dense_dtype)
    # Padded logit columns get a huge negative f32 bias so exp() underflows to 0.
    bd = jnp.pad(bdense.reshape(1, out_size).astype(jnp.float32),
                 ((0, 0), (0, out_pad - out_size)), constant_values=-1e30)

    kernel = functools.partial(policy_head_kernel, approx_recip=approx_recip)

    out_full = pl.pallas_call(
        kernel,
        out_shape=jax.ShapeDtypeStruct((bs_pad, out_pad), jnp.float32),
        grid_spec=pltpu.PrefetchScalarGridSpec(
            num_scalar_prefetch=0,
            grid=grid,
            in_specs=[
                # conv weights / bias: small scalar tables -> SMEM
                pl.BlockSpec(memory_space=pltpu.MemorySpace.SMEM),
                pl.BlockSpec(memory_space=pltpu.MemorySpace.SMEM),
                # x: tiled over the batch axis (double-buffered by the pipeline)
                pl.BlockSpec((block_bs, cb * P_pad), lambda i: (i, 0)),
                # dense weight / bias: same block every step -> stay VMEM-resident
                pl.BlockSpec((2 * P_pad, out_pad), lambda i: (0, 0)),
                pl.BlockSpec((1, out_pad), lambda i: (0, 0)),
            ],
            out_specs=pl.BlockSpec((block_bs, out_pad), lambda i: (i, 0)),
        ),
        compiler_params=pltpu.CompilerParams(
            # Batch axis is embarrassingly parallel -> 2-TC sharding on v7x,
            # harmless on single-TC v5e/v6e.
            dimension_semantics=("parallel",),
            # Tiny footprint; 32 MiB is within every generation's VMEM budget.
            vmem_limit_bytes=32 * 1024 * 1024,
        ),
    )(wconv_f, bconv_f, x_flat, wd, bd)

    return out_full[:bs, :out_size]


def policy_head_reference(x_nchw, wconv, bconv, gamma, beta, running_mean,
                          running_var, wdense, bdense, *, eps=1e-5):
    """Pure-JAX reference mirroring the PyTorch forward (eval-mode BN)."""
    bs = x_nchw.shape[0]
    y = jnp.einsum('oc,bchw->bohw', wconv, x_nchw) + bconv[None, :, None, None]
    scale = gamma / jnp.sqrt(running_var + eps)
    shift = beta - running_mean * scale
    y = y * scale[None, :, None, None] + shift[None, :, None, None]
    y = jnp.maximum(y, 0.0)
    flat = y.reshape(bs, -1)                      # channel-major, like torch .view
    logits = flat @ wdense.T + bdense
    return jax.nn.softmax(logits, axis=1)


if __name__ == "__main__":
    # Small shapes consistent with the module:
    #   in_shape = (cb, H, W); dense in_features = 2 * H * W
    bs, cb, H, W = 2, 4, 16, 16
    out_size = 64

    key = jax.random.PRNGKey(0)
    ks = jax.random.split(key, 9)

    x = jax.random.normal(ks[0], (bs, cb, H, W), jnp.float32)            # NCHW
    wconv = 0.20 * jax.random.normal(ks[1], (2, cb), jnp.float32)        # Conv2d 1x1 weight
    bconv = 0.10 * jax.random.normal(ks[2], (2,), jnp.float32)           # Conv2d bias
    gamma = 1.0 + 0.10 * jax.random.normal(ks[3], (2,), jnp.float32)     # BN weight
    beta = 0.10 * jax.random.normal(ks[4], (2,), jnp.float32)            # BN bias
    rmean = 0.10 * jax.random.normal(ks[5], (2,), jnp.float32)           # BN running_mean
    rvar = 1.0 + jnp.abs(jax.random.normal(ks[6], (2,), jnp.float32))    # BN running_var
    wdense = 0.05 * jax.random.normal(ks[7], (out_size, 2 * H * W), jnp.float32)
    bdense = 0.05 * jax.random.normal(ks[8], (out_size,), jnp.float32)

    ref = policy_head_reference(x, wconv, bconv, gamma, beta, rmean, rvar,
                                wdense, bdense)

    # f32 dense + exact reciprocal: tight numerical check
    out = policy_head(x, wconv, bconv, gamma, beta, rmean, rvar, wdense, bdense,
                      dense_dtype=jnp.float32, approx_recip=False)
    out = jax.block_until_ready(out)
    np.testing.assert_allclose(np.asarray(out), np.asarray(ref), rtol=5e-4, atol=5e-5)
    assert out.shape == (bs, out_size)
    np.testing.assert_allclose(np.asarray(out).sum(axis=1), 1.0, rtol=1e-5)

    # Production defaults (bf16 dense operands, approx reciprocal): looser check
    out_def = jax.block_until_ready(
        policy_head(x, wconv, bconv, gamma, beta, rmean, rvar, wdense, bdense))
    np.testing.assert_allclose(np.asarray(out_def), np.asarray(ref),
                               rtol=2e-2, atol=2e-3)

    # Multi-step grid path (exercises batch tiling / grid >= 2)
    bs2 = 20
    x2 = jax.random.normal(jax.random.PRNGKey(1), (bs2, cb, H, W), jnp.float32)
    ref2 = policy_head_reference(x2, wconv, bconv, gamma, beta, rmean, rvar,
                                 wdense, bdense)
    out2 = jax.block_until_ready(
        policy_head(x2, wconv, bconv, gamma, beta, rmean, rvar, wdense, bdense,
                    block_bs=8, dense_dtype=jnp.float32, approx_recip=False))
    np.testing.assert_allclose(np.asarray(out2), np.asarray(ref2),
                               rtol=5e-4, atol=5e-5)
    assert out2.shape == (bs2, out_size)

    print("KERNEL_OK")
</pallas_src>

<mosaic_0001>
module attributes {stable_mosaic.version = 11 : i64} {
  func.func @policy_head_kernel(%arg0: i32, %arg1: memref<2x4xf32, #tpu.memory_space<smem>>, %arg2: memref<2xf32, #tpu.memory_space<smem>>, %arg3: memref<8x1024xf32, #tpu.memory_space<vmem>>, %arg4: memref<512x128xf32, #tpu.memory_space<vmem>>, %arg5: memref<1x128xf32, #tpu.memory_space<vmem>>, %arg6: memref<8x128xf32, #tpu.memory_space<vmem>>) attributes {dimension_semantics = [#tpu.dimension_semantics<parallel>], iteration_bounds = array<i64: 1>, scalar_prefetch = 0 : i64, scratch_operands = 0 : i64, tpu.core_type = #tpu.core_type<tc>, window_params = [{transform_indices = @transform_0, window_bounds = array<i64: 2, 4>}, {transform_indices = @transform_1, window_bounds = array<i64: 2>}, {transform_indices = @transform_2, window_bounds = array<i64: 8, 1024>}, {pipeline_mode = #tpu.pipeline_mode<synchronous>, transform_indices = @transform_3, window_bounds = array<i64: 512, 128>}, {pipeline_mode = #tpu.pipeline_mode<synchronous>, transform_indices = @transform_4, window_bounds = array<i64: 1, 128>}, {transform_indices = @transform_5, window_bounds = array<i64: 8, 128>}]} {
    %c0 = arith.constant 0 : index
    %c0_0 = arith.constant 0 : index
    %0 = memref.load %arg1[%c0, %c0_0] : memref<2x4xf32, #tpu.memory_space<smem>>
    %c0_1 = arith.constant 0 : index
    %c0_2 = arith.constant 0 : index
    %1 = vector.load %arg3[%c0_1, %c0_2] : memref<8x1024xf32, #tpu.memory_space<vmem>>, vector<8x256xf32>
    %2 = vector.broadcast %0 : f32 to vector<8x256xf32>
    %3 = arith.mulf %2, %1 : vector<8x256xf32>
    %c0_3 = arith.constant 0 : index
    %c1 = arith.constant 1 : index
    %4 = memref.load %arg1[%c0_3, %c1] : memref<2x4xf32, #tpu.memory_space<smem>>
    %c0_4 = arith.constant 0 : index
    %c256 = arith.constant 256 : index
    %5 = vector.load %arg3[%c0_4, %c256] : memref<8x1024xf32, #tpu.memory_space<vmem>>, vector<8x256xf32>
    %6 = vector.broadcast %4 : f32 to vector<8x256xf32>
    %7 = arith.mulf %6, %5 : vector<8x256xf32>
    %8 = arith.addf %3, %7 : vector<8x256xf32>
    %c0_5 = arith.constant 0 : index
    %c2 = arith.constant 2 : index
    %9 = memref.load %arg1[%c0_5, %c2] : memref<2x4xf32, #tpu.memory_space<smem>>
    %c0_6 = arith.constant 0 : index
    %c512 = arith.constant 512 : index
    %10 = vector.load %arg3[%c0_6, %c512] : memref<8x1024xf32, #tpu.memory_space<vmem>>, vector<8x256xf32>
    %11 = vector.broadcast %9 : f32 to vector<8x256xf32>
    %12 = arith.mulf %11, %10 : vector<8x256xf32>
    %13 = arith.addf %8, %12 : vector<8x256xf32>
    %c0_7 = arith.constant 0 : index
    %c3 = arith.constant 3 : index
    %14 = memref.load %arg1[%c0_7, %c3] : memref<2x4xf32, #tpu.memory_space<smem>>
    %c0_8 = arith.constant 0 : index
    %c768 = arith.constant 768 : index
    %15 = vector.load %arg3[%c0_8, %c768] : memref<8x1024xf32, #tpu.memory_space<vmem>>, vector<8x256xf32>
    %16 = vector.broadcast %14 : f32 to vector<8x256xf32>
    %17 = arith.mulf %16, %15 : vector<8x256xf32>
    %18 = arith.addf %13, %17 : vector<8x256xf32>
    %c0_9 = arith.constant 0 : index
    %19 = memref.load %arg2[%c0_9] : memref<2xf32, #tpu.memory_space<smem>>
    %20 = vector.broadcast %19 : f32 to vector<8x256xf32>
    %21 = arith.addf %18, %20 : vector<8x256xf32>
    %cst = arith.constant 0.000000e+00 : f32
    %22 = vector.broadcast %cst : f32 to vector<8x256xf32>
    %23 = arith.maximumf %21, %22 : vector<8x256xf32>
    %c0_10 = arith.constant 0 : index
    %c0_11 = arith.constant 0 : index
    %24 = vector.load %arg4[%c0_10, %c0_11] : memref<512x128xf32, #tpu.memory_space<vmem>>, vector<256x128xf32>
    %cst_12 = arith.constant dense<0.000000e+00> : vector<8x128xf32>
    %25 = tpu.matmul %23, %24, %cst_12 {dimension_numbers = #tpu.dot_dimension_numbers<[1], [0], [0], [1], [0, 0, 1, 1], [], []>} : vector<8x256xf32>, vector<256x128xf32>, vector<8x128xf32> -> vector<8x128xf32>
    %c1_13 = arith.constant 1 : index
    %c0_14 = arith.constant 0 : index
    %26 = memref.load %arg1[%c1_13, %c0_14] : memref<2x4xf32, #tpu.memory_space<smem>>
    %c0_15 = arith.constant 0 : index
    %c0_16 = arith.constant 0 : index
    %27 = vector.load %arg3[%c0_15, %c0_16] : memref<8x1024xf32, #tpu.memory_space<vmem>>, vector<8x256xf32>
    %28 = vector.broadcast %26 : f32 to vector<8x256xf32>
    %29 = arith.mulf %28, %27 : vector<8x256xf32>
    %c1_17 = arith.constant 1 : index
    %c1_18 = arith.constant 1 : index
    %30 = memref.load %arg1[%c1_17, %c1_18] : memref<2x4xf32, #tpu.memory_space<smem>>
    %c0_19 = arith.constant 0 : index
    %c256_20 = arith.constant 256 : index
    %31 = vector.load %arg3[%c0_19, %c256_20] : memref<8x1024xf32, #tpu.memory_space<vmem>>, vector<8x256xf32>
    %32 = vector.broadcast %30 : f32 to vector<8x256xf32>
    %33 = arith.mulf %32, %31 : vector<8x256xf32>
    %34 = arith.addf %29, %33 : vector<8x256xf32>
    %c1_21 = arith.constant 1 : index
    %c2_22 = arith.constant 2 : index
    %35 = memref.load %arg1[%c1_21, %c2_22] : memref<2x4xf32, #tpu.memory_space<smem>>
    %c0_23 = arith.constant 0 : index
    %c512_24 = arith.constant 512 : index
    %36 = vector.load %arg3[%c0_23, %c512_24] : memref<8x1024xf32, #tpu.memory_space<vmem>>, vector<8x256xf32>
    %37 = vector.broadcast %35 : f32 to vector<8x256xf32>
    %38 = arith.mulf %37, %36 : vector<8x256xf32>
    %39 = arith.addf %34, %38 : vector<8x256xf32>
    %c1_25 = arith.constant 1 : index
    %c3_26 = arith.constant 3 : index
    %40 = memref.load %arg1[%c1_25, %c3_26] : memref<2x4xf32, #tpu.memory_space<smem>>
    %c0_27 = arith.constant 0 : index
    %c768_28 = arith.constant 768 : index
    %41 = vector.load %arg3[%c0_27, %c768_28] : memref<8x1024xf32, #tpu.memory_space<vmem>>, vector<8x256xf32>
    %42 = vector.broadcast %40 : f32 to vector<8x256xf32>
    %43 = arith.mulf %42, %41 : vector<8x256xf32>
    %44 = arith.addf %39, %43 : vector<8x256xf32>
    %c1_29 = arith.constant 1 : index
    %45 = memref.load %arg2[%c1_29] : memref<2xf32, #tpu.memory_space<smem>>
    %46 = vector.broadcast %45 : f32 to vector<8x256xf32>
    %47 = arith.addf %44, %46 : vector<8x256xf32>
    %cst_30 = arith.constant 0.000000e+00 : f32
    %48 = vector.broadcast %cst_30 : f32 to vector<8x256xf32>
    %49 = arith.maximumf %47, %48 : vector<8x256xf32>
    %c256_31 = arith.constant 256 : index
    %c0_32 = arith.constant 0 : index
    %50 = vector.load %arg4[%c256_31, %c0_32] : memref<512x128xf32, #tpu.memory_space<vmem>>, vector<256x128xf32>
    %cst_33 = arith.constant dense<0.000000e+00> : vector<8x128xf32>
    %51 = tpu.matmul %49, %50, %cst_33 {dimension_numbers = #tpu.dot_dimension_numbers<[1], [0], [0], [1], [0, 0, 1, 1], [], []>} : vector<8x256xf32>, vector<256x128xf32>, vector<8x128xf32> -> vector<8x128xf32>
    %52 = arith.addf %25, %51 : vector<8x128xf32>
    %c0_34 = arith.constant 0 : index
    %c0_35 = arith.constant 0 : index
    %53 = vector.load %arg5[%c0_34, %c0_35] : memref<1x128xf32, #tpu.memory_space<vmem>>, vector<1x128xf32>
    %54 = vector.broadcast %53 : vector<1x128xf32> to vector<8x128xf32>
    %55 = arith.addf %52, %54 : vector<8x128xf32>
    %cst_36 = arith.constant dense<0xFF800000> : vector<8xf32>
    %56 = vector.multi_reduction <maximumf>, %55, %cst_36 [1] : vector<8x128xf32> to vector<8xf32>
    %57 = vector.shape_cast %56 : vector<8xf32> to vector<8x1xf32>
    %58 = vector.broadcast %57 : vector<8x1xf32> to vector<8x128xf32>
    %59 = arith.subf %55, %58 : vector<8x128xf32>
    %60 = math.exp %59 : vector<8x128xf32>
    %cst_37 = arith.constant dense<0.000000e+00> : vector<8xf32>
    %61 = vector.multi_reduction <add>, %60, %cst_37 [1] : vector<8x128xf32> to vector<8xf32>
    %62 = vector.shape_cast %61 : vector<8xf32> to vector<8x1xf32>
    %63 = tpu.reciprocal %62 : vector<8x1xf32> -> vector<8x1xf32>
    %64 = vector.broadcast %63 : vector<8x1xf32> to vector<8x128xf32>
    %65 = arith.mulf %60, %64 : vector<8x128xf32>
    %c0_38 = arith.constant 0 : index
    %c0_39 = arith.constant 0 : index
    %66 = vector.load %arg6[%c0_38, %c0_39] : memref<8x128xf32, #tpu.memory_space<vmem>>, vector<8x128xf32>
    tpu.vector_store %arg6[%c0_38, %c0_39], %65 {strides = array<i32>} : memref<8x128xf32, #tpu.memory_space<vmem>>, vector<8x128xf32>,
    return
  }
  func.func @transform_0(%arg0: i32) -> (i32, i32) {
    %c0_i32 = arith.constant 0 : i32
    %c0_i32_0 = arith.constant 0 : i32
    %c0_i32_1 = arith.constant 0 : i32
    return %c0_i32, %c0_i32_0 : i32, i32
  }
  func.func @transform_1(%arg0: i32) -> i32 {
    %c0_i32 = arith.constant 0 : i32
    %c0_i32_0 = arith.constant 0 : i32
    return %c0_i32 : i32
  }
  func.func @transform_2(%arg0: i32) -> (i32, i32) {
    %c0_i32 = arith.constant 0 : i32
    %c0_i32_0 = arith.constant 0 : i32
    return %arg0, %c0_i32 : i32, i32
  }
  func.func @transform_3(%arg0: i32) -> (i32, i32) {
    %c0_i32 = arith.constant 0 : i32
    %c0_i32_0 = arith.constant 0 : i32
    %c0_i32_1 = arith.constant 0 : i32
    return %c0_i32, %c0_i32_0 : i32, i32
  }
  func.func @transform_4(%arg0: i32) -> (i32, i32) {
    %c0_i32 = arith.constant 0 : i32
    %c0_i32_0 = arith.constant 0 : i32
    %c0_i32_1 = arith.constant 0 : i32
    return %c0_i32, %c0_i32_0 : i32, i32
  }
  func.func @transform_5(%arg0: i32) -> (i32, i32) {
    %c0_i32 = arith.constant 0 : i32
    %c0_i32_0 = arith.constant 0 : i32
    return %arg0, %c0_i32 : i32, i32
  }
}

</mosaic_0001>

<llo_original>
// kernel: tpu_custom_call.1
$region0: #{tpu_custom_call.1}
  #allocation0 [shape = 'u32[]', space=smem, size = 0x4, offset = 0x4, fixed_abs, tag = 'smem constant byte address 0x4 - core index']
  #allocation1 [shape = 'u32[144,128]{1,0:T(1,128)}', space=vmem, size = 0x12000, scoped, tag = 'internal scratch']
  %s0 = inlined_call_operand.hbm [shape: f32[2,4], index: 0, kind: input, shape index: {}]
  %s1 = inlined_call_operand.vmem [shape: f32[2], index: 1, kind: input, shape index: {}]
  %s2 = inlined_call_operand.hbm [shape: f32[8,1024], index: 2, kind: input, shape index: {}]
  %s3 = inlined_call_operand.hbm [shape: f32[512,128], index: 3, kind: input, shape index: {}]
  %s4 = inlined_call_operand.vmem [shape: f32[1,128], index: 4, kind: input, shape index: {}]
  %s5 = inlined_call_operand.hbm [shape: f32[8,128], index: 5, kind: output, shape index: {}]
  %s6 = sld [smem:[#allocation0]]
  $region46: #{tpu_custom_call.1} parent=0
    _
  %s8 = ssub.s32 1, %s6
  %s9 = scalar_select 0, %s8, %s6
  $region1: #{tpu_custom_call.1} parent=0
    #allocation2 [shape = 'u8[1024]{0}', space=smem, size = 0x400, scoped, tag = 'input window, operand 0, single buffered']
    #allocation3 [shape = 's32[1]{0}', space=sflag, size = 0x4, scoped, tag = 'scoped memory for tpu_custom_call.1']
    #allocation4 [shape = 's32[1]{0}', space=sflag, size = 0x4, scoped, tag = 'scoped memory for tpu_custom_call.1']
    #allocation5 [shape = 's32[1]{0}', space=sflag, size = 0x4, scoped, tag = 'scoped memory for tpu_custom_call.1']
    #allocation6 [shape = 's32[1]{0}', space=sflag, size = 0x4, scoped, tag = 'scoped memory for tpu_custom_call.1']
    #allocation7 [shape = 'u8[512]{0}', space=smem, size = 0x200, scoped, tag = 'input window, operand 1, single buffered']
    #allocation8 [shape = 'u8[32768]{0}', space=vmem, size = 0x8000, scoped, tag = 'input window, operand 2, single buffered']
    #allocation9 [shape = 'u8[262144]{0}', space=vmem, size = 0x40000, scoped, tag = 'input window, operand 3, single buffered']
    #allocation10 [shape = 's32[1]{0}', space=sflag, size = 0x4, scoped, tag = 'scoped memory for tpu_custom_call.1']
    #allocation11 [shape = 'u8[4096]{0}', space=vmem, size = 0x1000, scoped, tag = 'output window, operand 0, single buffered']
    %10 = vsyncpa [#allocation5], 0
    %11 = vsyncpa [#allocation6], 0
    %12 = vsyncpa [#allocation3], 0
    %13 = vsyncpa [#allocation10], 0
    %14 = vsyncpa [#allocation4], 0
    // Predicated region
    $region2: #{tpu_custom_call.1} parent=1 // pred_check
      _
    $region3: #{tpu_custom_call.1} parent=1 // pred_check_branch
      %16 = sbr.rel (0) target = $region5
    $region4: #{tpu_custom_call.1} parent=1 // pred_region
      %s18 = ssub.s32 32, 32
      %19 = vsyncadd [#allocation5], %s18
      %22 = dma.hbm_to_smem %s0, 32, [#allocation2], [#allocation5]
    $region5: #{tpu_custom_call.1} parent=1 // pred_fallthru
      _
    // Predicated region
    $region6: #{tpu_custom_call.1} parent=1 // pred_check
      _
    $region7: #{tpu_custom_call.1} parent=1 // pred_check_branch
      %24 = sbr.rel (0) target = $region9
    $region8: #{tpu_custom_call.1} parent=1 // pred_region
      %s26 = ssub.s32 16, 16
      %27 = vsyncadd [#allocation6], %s26
      %s29 = sshll.u32 %s1, 4
      %s30 = int_to_ptr.vmem [resolvable:$true] %s29
      %32 = dma.vmem_to_smem %s30, 16, [#allocation7], [#allocation6]
    $region9: #{tpu_custom_call.1} parent=1 // pred_fallthru
      _
    // Predicated region
    $region10: #{tpu_custom_call.1} parent=1 // pred_check
      _
    $region11: #{tpu_custom_call.1} parent=1 // pred_check_branch
      %34 = sbr.rel (0) target = $region13
    $region12: #{tpu_custom_call.1} parent=1 // pred_region
      %s36 = ssub.s32 1024, 1024
      %37 = vsyncadd [#allocation3], %s36
      %s39 = sshll.u32 [#allocation8], 4
      %s40 = int_to_ptr.vmem [resolvable:$true] %s39
      %42 = dma.hbm_to_vmem [thread:$0]  %s2, 1024, %s40, [#allocation3]
    $region13: #{tpu_custom_call.1} parent=1 // pred_fallthru
      _
    // Predicated region
    $region14: #{tpu_custom_call.1} parent=1 // pred_check
      _
    $region15: #{tpu_custom_call.1} parent=1 // pred_check_branch
      %44 = sbr.rel (0) target = $region17
    $region16: #{tpu_custom_call.1} parent=1 // pred_region
      %s46 = ssub.s32 8192, 8192
      %47 = vsyncadd [#allocation10], %s46
      %s48 = sshll.u32 [#allocation9], 4
      %s49 = int_to_ptr.vmem [resolvable:$true] %s48
      %54 = dma.hbm_to_vmem [thread:$0]  %s3, 8192, %s49, [#allocation10], 128, 128, 8
    $region17: #{tpu_custom_call.1} parent=1 // pred_fallthru
      _
    // Predicated region
    $region18: #{tpu_custom_call.1} parent=1 // pred_check
      _
    $region19: #{tpu_custom_call.1} parent=1 // pred_check_branch
      %56 = sbr.rel (0) target = $region21
    $region20: #{tpu_custom_call.1} parent=1 // pred_region
      _
    $region21: #{tpu_custom_call.1} parent=1 // pred_fallthru
      _
    // Predicated region
    $region22: #{tpu_custom_call.1} parent=1 // pred_check
      _
    $region23: #{tpu_custom_call.1} parent=1 // pred_check_branch
      %58 = sbr.rel (0) target = $region25
    $region24: #{tpu_custom_call.1} parent=1 // pred_region
      %59 = dma.done [#allocation5], 32
    $region25: #{tpu_custom_call.1} parent=1 // pred_fallthru
      _
    // Predicated region
    $region26: #{tpu_custom_call.1} parent=1 // pred_check
      _
    $region27: #{tpu_custom_call.1} parent=1 // pred_check_branch
      %61 = sbr.rel (0) target = $region29
    $region28: #{tpu_custom_call.1} parent=1 // pred_region
      %62 = dma.done [#allocation6], 16
    $region29: #{tpu_custom_call.1} parent=1 // pred_fallthru
      _
    // Predicated region
    $region30: #{tpu_custom_call.1} parent=1 // pred_check
      _
    $region31: #{tpu_custom_call.1} parent=1 // pred_check_branch
      %64 = sbr.rel (0) target = $region33
    $region32: #{tpu_custom_call.1} parent=1 // pred_region
      %65 = dma.done [#allocation3], 1024
    $region33: #{tpu_custom_call.1} parent=1 // pred_fallthru
      _
    // Predicated region
    $region34: #{tpu_custom_call.1} parent=1 // pred_check
      _
    $region35: #{tpu_custom_call.1} parent=1 // pred_check_branch
      %67 = sbr.rel (0) target = $region37
    $region36: #{tpu_custom_call.1} parent=1 // pred_region
      %68 = dma.done [#allocation10], 8192
    $region37: #{tpu_custom_call.1} parent=1 // pred_fallthru
      _
    %69 = sfence
    %s70 = sld [smem:[#allocation2]]
    %v71 = vld [vmem:[#allocation8] sm:$0xff]
    %v72 = vld [vmem:[#allocation8 + $0x8] sm:$0xff]
    %v73 = vstv %s70
    %v74 = vmul.f32 %v73, %v71
    %v75 = vmul.f32 %v73, %v72
    %s76 = sld [smem:[#allocation2 + $0x1]]
    %v77 = vld [vmem:[#allocation8 + $0x10] sm:$0xff]
    %v78 = vld [vmem:[#allocation8 + $0x18] sm:$0xff]
    %v79 = vstv %s76
    %v80 = vmul.f32 %v79, %v77
    %v81 = vmul.f32 %v79, %v78
    %v82 = vadd.f32 %v74, %v80
    %v83 = vadd.f32 %v75, %v81
    %s84 = sld [smem:[#allocation2 + $0x2]]
    %v85 = vld [vmem:[#allocation8 + $0x20] sm:$0xff]
    %v86 = vld [vmem:[#allocation8 + $0x28] sm:$0xff]
    %v87 = vstv %s84
    %v88 = vmul.f32 %v87, %v85
    %v89 = vmul.f32 %v87, %v86
    %v90 = vadd.f32 %v82, %v88
    %v91 = vadd.f32 %v83, %v89
    %s92 = sld [smem:[#allocation2 + $0x3]]
    %v93 = vld [vmem:[#allocation8 + $0x30] sm:$0xff]
    %v94 = vld [vmem:[#allocation8 + $0x38] sm:$0xff]
    %v95 = vstv %s92
    %v96 = vmul.f32 %v95, %v93
    %v97 = vmul.f32 %v95, %v94
    %v98 = vadd.f32 %v90, %v96
    %v99 = vadd.f32 %v91, %v97
    %s100 = sld [smem:[#allocation7]]
    %v101 = vstv %s100
    %v102 = vadd.f32 %v98, %v101
    %v103 = vadd.f32 %v99, %v101
    %v104 = vmax.f32 %v102, 0.0
    %v105 = vmax.f32 %v103, 0.0
    %v106 = vld [vmem:[#allocation9] sm:$0xff]
    %v107 = vld [vmem:[#allocation9 + $0x8] sm:$0xff]
    %v108 = vld [vmem:[#allocation9 + $0x10] sm:$0xff]
    %v109 = vld [vmem:[#allocation9 + $0x18] sm:$0xff]
    %v110 = vld [vmem:[#allocation9 + $0x20] sm:$0xff]
    %v111 = vld [vmem:[#allocation9 + $0x28] sm:$0xff]
    %v112 = vld [vmem:[#allocation9 + $0x30] sm:$0xff]
    %v113 = vld [vmem:[#allocation9 + $0x38] sm:$0xff]
    %v114 = vld [vmem:[#allocation9 + $0x40] sm:$0xff]
    %v115 = vld [vmem:[#allocation9 + $0x48] sm:$0xff]
    %v116 = vld [vmem:[#allocation9 + $0x50] sm:$0xff]
    %v117 = vld [vmem:[#allocation9 + $0x58] sm:$0xff]
    %v118 = vld [vmem:[#allocation9 + $0x60] sm:$0xff]
    %v119 = vld [vmem:[#allocation9 + $0x68] sm:$0xff]
    %v120 = vld [vmem:[#allocation9 + $0x70] sm:$0xff]
    %v121 = vld [vmem:[#allocation9 + $0x78] sm:$0xff]
    %v122 = vld [vmem:[#allocation9 + $0x80] sm:$0xff]
    %v123 = vld [vmem:[#allocation9 + $0x88] sm:$0xff]
    %v124 = vld [vmem:[#allocation9 + $0x90] sm:$0xff]
    %v125 = vld [vmem:[#allocation9 + $0x98] sm:$0xff]
    %v126 = vld [vmem:[#allocation9 + $0xa0] sm:$0xff]
    %v127 = vld [vmem:[#allocation9 + $0xa8] sm:$0xff]
    %v128 = vld [vmem:[#allocation9 + $0xb0] sm:$0xff]
    %v129 = vld [vmem:[#allocation9 + $0xb8] sm:$0xff]
    %v130 = vld [vmem:[#allocation9 + $0xc0] sm:$0xff]
    %v131 = vld [vmem:[#allocation9 + $0xc8] sm:$0xff]
    %v132 = vld [vmem:[#allocation9 + $0xd0] sm:$0xff]
    %v133 = vld [vmem:[#allocation9 + $0xd8] sm:$0xff]
    %v134 = vld [vmem:[#allocation9 + $0xe0] sm:$0xff]
    %v135 = vld [vmem:[#allocation9 + $0xe8] sm:$0xff]
    %v136 = vld [vmem:[#allocation9 + $0xf0] sm:$0xff]
    %v137 = vld [vmem:[#allocation9 + $0xf8] sm:$0xff]
    %s138 = sld [smem:[#allocation2 + $0x80]]
    %v139 = vstv %s138
    %v140 = vmul.f32 %v139, %v71
    %v141 = vmul.f32 %v139, %v72
    %s142 = sld [smem:[#allocation2 + $0x81]]
    %v143 = vstv %s142
    %v144 = vmul.f32 %v143, %v77
    %v145 = vmul.f32 %v143, %v78
    %v146 = vadd.f32 %v140, %v144
    %v147 = vadd.f32 %v141, %v145
    %s148 = sld [smem:[#allocation2 + $0x82]]
    %v149 = vstv %s148
    %v150 = vmul.f32 %v149, %v85
    %v151 = vmul.f32 %v149, %v86
    %v152 = vadd.f32 %v146, %v150
    %v153 = vadd.f32 %v147, %v151
    %s154 = sld [smem:[#allocation2 + $0x83]]
    %v155 = vstv %s154
    %v156 = vmul.f32 %v155, %v93
    %v157 = vmul.f32 %v155, %v94
    %v158 = vadd.f32 %v152, %v156
    %v159 = vadd.f32 %v153, %v157
    %s160 = sld [smem:[#allocation7 + $0x1]]
    %v161 = vstv %s160
    %v162 = vadd.f32 %v158, %v161
    %v163 = vadd.f32 %v159, %v161
    %v164 = vmax.f32 %v162, 0.0
    %v165 = vmax.f32 %v163, 0.0
    %v166 = vld [vmem:[#allocation9 + $0x100] sm:$0xff]
    %v167 = vld [vmem:[#allocation9 + $0x108] sm:$0xff]
    %v168 = vld [vmem:[#allocation9 + $0x110] sm:$0xff]
    %v169 = vld [vmem:[#allocation9 + $0x118] sm:$0xff]
    %v170 = vld [vmem:[#allocation9 + $0x120] sm:$0xff]
    %v171 = vld [vmem:[#allocation9 + $0x128] sm:$0xff]
    %v172 = vld [vmem:[#allocation9 + $0x130] sm:$0xff]
    %v173 = vld [vmem:[#allocation9 + $0x138] sm:$0xff]
    %v174 = vld [vmem:[#allocation9 + $0x140] sm:$0xff]
    %v175 = vld [vmem:[#allocation9 + $0x148] sm:$0xff]
    %v176 = vld [vmem:[#allocation9 + $0x150] sm:$0xff]
    %v177 = vld [vmem:[#allocation9 + $0x158] sm:$0xff]
    %v178 = vld [vmem:[#allocation9 + $0x160] sm:$0xff]
    %v179 = vld [vmem:[#allocation9 + $0x168] sm:$0xff]
    %v180 = vld [vmem:[#allocation9 + $0x170] sm:$0xff]
    %v181 = vld [vmem:[#allocation9 + $0x178] sm:$0xff]
    %v182 = vld [vmem:[#allocation9 + $0x180] sm:$0xff]
    %v183 = vld [vmem:[#allocation9 + $0x188] sm:$0xff]
    %v184 = vld [vmem:[#allocation9 + $0x190] sm:$0xff]
    %v185 = vld [vmem:[#allocation9 + $0x198] sm:$0xff]
    %v186 = vld [vmem:[#allocation9 + $0x1a0] sm:$0xff]
    %v187 = vld [vmem:[#allocation9 + $0x1a8] sm:$0xff]
    %v188 = vld [vmem:[#allocation9 + $0x1b0] sm:$0xff]
    %v189 = vld [vmem:[#allocation9 + $0x1b8] sm:$0xff]
    %v190 = vld [vmem:[#allocation9 + $0x1c0] sm:$0xff]
    %v191 = vld [vmem:[#allocation9 + $0x1c8] sm:$0xff]
    %v192 = vld [vmem:[#allocation9 + $0x1d0] sm:$0xff]
    %v193 = vld [vmem:[#allocation9 + $0x1d8] sm:$0xff]
    %v194 = vld [vmem:[#allocation9 + $0x1e0] sm:$0xff]
    %v195 = vld [vmem:[#allocation9 + $0x1e8] sm:$0xff]
    %v196 = vld [vmem:[#allocation9 + $0x1f0] sm:$0xff]
    %v197 = vld [vmem:[#allocation9 + $0x1f8] sm:$0xff]
    %198 = vmatprep.subr.mxu0 0.0
    %199 = vmatpush1.msra.mxu0 %v181
    %200 = vmatprep.subr.mxu0 0.0
    %201 = vmatpush1.msra.mxu0 %v180
    %202 = vmatprep.subr.mxu0 0.0
    %203 = vmatpush1.msra.mxu0 %v179
    %204 = vmatprep.subr.mxu0 0.0
    %205 = vmatpush1.msra.mxu0 %v178
    %206 = vmatprep.subr.mxu0 0.0
    %207 = vmatpush1.msra.mxu0 %v177
    %208 = vmatprep.subr.mxu0 0.0
    %209 = vmatpush1.msra.mxu0 %v176
    %210 = vmatprep.subr.mxu0 0.0
    %211 = vmatpush1.msra.mxu0 %v175
    %212 = vmatprep.subr.mxu0 0.0
    %213 = vmatpush1.msra.mxu0 %v174
    %214 = vmatprep.subr.mxu0 0.0
    %215 = vmatpush1.msra.mxu0 %v173
    %216 = vmatprep.subr.mxu0 0.0
    %217 = vmatpush1.msra.mxu0 %v172
    %218 = vmatprep.subr.mxu0 0.0
    %219 = vmatpush1.msra.mxu0 %v171
    %220 = vmatprep.subr.mxu0 0.0
    %221 = vmatpush1.msra.mxu0 %v170
    %222 = vmatprep.subr.mxu0 0.0
    %223 = vmatpush1.msra.mxu0 %v169
    %224 = vmatprep.subr.mxu0 0.0
    %225 = vmatpush1.msra.mxu0 %v168
    %226 = vmatprep.subr.mxu0 0.0
    %227 = vmatpush1.msra.mxu0 %v167
    %228 = vmatprep.subr.mxu0 0.0
    %229 = vmatpush1.msra.mxu0 %v166
    %230 = vmatprep.subr.mxu0 0.0
    %231 = vmatpush2.msra.mxu0 %v197
    %232 = vmatprep.subr.mxu0 0.0
    %233 = vmatpush2.msra.mxu0 %v196
    %234 = vmatprep.subr.mxu0 0.0
    %235 = vmatpush2.msra.mxu0 %v195
    %236 = vmatprep.subr.mxu0 0.0
    %237 = vmatpush2.msra.mxu0 %v194
    %238 = vmatprep.subr.mxu0 0.0
    %239 = vmatpush2.msra.mxu0 %v193
    %240 = vmatprep.subr.mxu0 0.0
    %241 = vmatpush2.msra.mxu0 %v192
    %242 = vmatprep.subr.mxu0 0.0
    %243 = vmatpush2.msra.mxu0 %v191
    %244 = vmatprep.subr.mxu0 0.0
    %245 = vmatpush2.msra.mxu0 %v190
    %246 = vmatprep.subr.mxu0 0.0
    %247 = vmatpush2.msra.mxu0 %v189
    %248 = vmatprep.subr.mxu0 0.0
    %249 = vmatpush2.msra.mxu0 %v188
    %250 = vmatprep.subr.mxu0 0.0
    %251 = vmatpush2.msra.mxu0 %v187
    %252 = vmatprep.subr.mxu0 0.0
    %253 = vmatpush2.msra.mxu0 %v186
    %254 = vmatprep.subr.mxu0 0.0
    %255 = vmatpush2.msra.mxu0 %v185
    %256 = vmatprep.subr.mxu0 0.0
    %257 = vmatpush2.msra.mxu0 %v184
    %258 = vmatprep.subr.mxu0 0.0
    %259 = vmatpush2.msra.mxu0 %v183
    %260 = vmatprep.subr.mxu0 0.0
    %261 = vmatpush2.msra.mxu0 %v182
    %262 = vmatprep.mubr.f32.mxu0 %v165
    %263 = vmatmul.mubr.f32.gmra.mxu0 %v164
    %v264 = vpop.f32.mrf.mxu0
    %v265 = vadd.f32 0.0, %v264
    %v266 = vpop.f32.mrf.mxu0
    %267 = vdwg.mxu0
    %268 = vmatprep.subr.mxu0 0.0
    %269 = vmatpush1.msra.mxu0 %v121
    %270 = vmatprep.subr.mxu0 0.0
    %271 = vmatpush1.msra.mxu0 %v120
    %272 = vmatprep.subr.mxu0 0.0
    %273 = vmatpush1.msra.mxu0 %v119
    %274 = vmatprep.subr.mxu0 0.0
    %275 = vmatpush1.msra.mxu0 %v118
    %276 = vmatprep.subr.mxu0 0.0
    %277 = vmatpush1.msra.mxu0 %v117
    %278 = vmatprep.subr.mxu0 0.0
    %279 = vmatpush1.msra.mxu0 %v116
    %280 = vmatprep.subr.mxu0 0.0
    %281 = vmatpush1.msra.mxu0 %v115
    %282 = vmatprep.subr.mxu0 0.0
    %283 = vmatpush1.msra.mxu0 %v114
    %284 = vmatprep.subr.mxu0 0.0
    %285 = vmatpush1.msra.mxu0 %v113
    %286 = vmatprep.subr.mxu0 0.0
    %287 = vmatpush1.msra.mxu0 %v112
    %288 = vmatprep.subr.mxu0 0.0
    %289 = vmatpush1.msra.mxu0 %v111
    %290 = vmatprep.subr.mxu0 0.0
    %291 = vmatpush1.msra.mxu0 %v110
    %292 = vmatprep.subr.mxu0 0.0
    %293 = vmatpush1.msra.mxu0 %v109
    %294 = vmatprep.subr.mxu0 0.0
    %295 = vmatpush1.msra.mxu0 %v108
    %296 = vmatprep.subr.mxu0 0.0
    %297 = vmatpush1.msra.mxu0 %v107
    %298 = vmatprep.subr.mxu0 0.0
    %299 = vmatpush1.msra.mxu0 %v106
    %300 = vmatprep.subr.mxu0 0.0
    %301 = vmatpush2.msra.mxu0 %v137
    %302 = vmatprep.subr.mxu0 0.0
    %303 = vmatpush2.msra.mxu0 %v136
    %304 = vmatprep.subr.mxu0 0.0
    %305 = vmatpush2.msra.mxu0 %v135
    %306 = vmatprep.subr.mxu0 0.0
    %307 = vmatpush2.msra.mxu0 %v134
    %308 = vmatprep.subr.mxu0 0.0
    %309 = vmatpush2.msra.mxu0 %v133
    %310 = vmatprep.subr.mxu0 0.0
    %311 = vmatpush2.msra.mxu0 %v132
    %312 = vmatprep.subr.mxu0 0.0
    %313 = vmatpush2.msra.mxu0 %v131
    %314 = vmatprep.subr.mxu0 0.0
    %315 = vmatpush2.msra.mxu0 %v130
    %316 = vmatprep.subr.mxu0 0.0
    %317 = vmatpush2.msra.mxu0 %v129
    %318 = vmatprep.subr.mxu0 0.0
    %319 = vmatpush2.msra.mxu0 %v128
    %320 = vmatprep.subr.mxu0 0.0
    %321 = vmatpush2.msra.mxu0 %v127
    %322 = vmatprep.subr.mxu0 0.0
    %323 = vmatpush2.msra.mxu0 %v126
    %324 = vmatprep.subr.mxu0 0.0
    %325 = vmatpush2.msra.mxu0 %v125
    %326 = vmatprep.subr.mxu0 0.0
    %327 = vmatpush2.msra.mxu0 %v124
    %328 = vmatprep.subr.mxu0 0.0
    %329 = vmatpush2.msra.mxu0 %v123
    %330 = vmatprep.subr.mxu0 0.0
    %331 = vmatpush2.msra.mxu0 %v122
    %332 = vmatprep.mubr.f32.mxu0 %v105
    %333 = vmatmul.mubr.f32.gmra.mxu0 %v104
    %v334 = vpop.f32.mrf.mxu0
    %v335 = vadd.f32 %v265, %v334
    %v336 = vpop.f32.mrf.mxu0
    %337 = vdwg.mxu0
    %v338 = vld [vmem:[%s4] sm:$0x1]
    %v340 = vlaneseq
    %v341 = vshrl.u32 %v340, 7
    %v342 = vsub.s32 0, %v341
    %v343 = vrot.slane %v338, %v342
    %v345 = vadd.f32 %v335, %v343
    %346 = vmax.xlane.f32.xlu0 %v345
    %v347 = vpop.xlane.xlu0 %346
    %v348 = vsub.f32 %v345, %v347
    %v349 = vmul.f32 %v348, 1.442695
    %v350 = vpow.pop %v349
    %351 = vadd.xlane.f32.xlu0 %v350
    %v352 = vpop.xlane.xlu0 %351
    %v353 = vrcp.pop %v352
    %v354 = vmul.f32 %v350, %v353
    %355 = vst [vmem:[#allocation11] sm:$0xff] %v354
    // Predicated region
    $region38: #{tpu_custom_call.1} parent=1 // pred_check
      _
    $region39: #{tpu_custom_call.1} parent=1 // pred_check_branch
      %357 = sbr.rel (0) target = $region41
    $region40: #{tpu_custom_call.1} parent=1 // pred_region
      %s359 = ssub.s32 128, 128
      %360 = vsyncadd [#allocation4], %s359
      %s362 = sshll.u32 [#allocation11], 4
      %s363 = int_to_ptr.vmem [resolvable:$true] %s362
      %365 = dma.vmem_to_hbm [thread:$0]  %s363, 128, %s5, [#allocation4]
    $region41: #{tpu_custom_call.1} parent=1 // pred_fallthru
      _
    // Predicated region
    $region42: #{tpu_custom_call.1} parent=1 // pred_check
      _
    $region43: #{tpu_custom_call.1} parent=1 // pred_check_branch
      %367 = sbr.rel (0) target = $region45
    $region44: #{tpu_custom_call.1} parent=1 // pred_region
      %368 = dma.done [#allocation4], 128
    $region45: #{tpu_custom_call.1} parent=1 // pred_fallthru
      _
    %369 = vsyncpa [#allocation3], 1
    %370 = vsyncpa [#allocation10], 1
    %371 = vsyncpa [#allocation4], 1
    %372 = vsyncpa [#allocation5], 1
    %373 = vsyncpa [#allocation6], 1

</llo_original>
